<compile_context>
chip_gen: v5e
topology: v5e:2x2
jax: 0.10.0
libtpu: 0.0.40
codegen_flags: <defaults>
</compile_context>

<pallas_src>
import functools

import jax
import jax.numpy as jnp
from jax import lax
from jax.experimental import pallas as pl
from jax.experimental.pallas import tpu as pltpu

BN_EPS = 1e-5
LANE = 128


def _round_up(x, m):
    return (x + m - 1) // m * m


# ---------------------------------------------------------------------------
# Pass 1: per-feature sum / sum-of-squares of h = x @ w1 (BatchNorm statistics)
# ---------------------------------------------------------------------------
def _stats_kernel(x_ref, w1_ref, sum_ref, sq_ref):
    i = pl.program_id(0)

    @pl.when(i == 0)
    def _():
        sum_ref[...] = jnp.zeros_like(sum_ref)
        sq_ref[...] = jnp.zeros_like(sq_ref)

    # bf16 operands, f32 accumulation on the MXU.
    h = jnp.dot(x_ref[...], w1_ref[...], preferred_element_type=jnp.float32)
    # Padded batch rows of x are all-zero and (with b1 dropped) produce h == 0,
    # so they contribute nothing to either sum; the divide uses the true batch
    # size in pass 2 -> no in-kernel masking needed.
    sum_ref[...] += jnp.sum(h, axis=0, keepdims=True)
    sq_ref[...] += jnp.sum(h * h, axis=0, keepdims=True)


# ---------------------------------------------------------------------------
# Pass 2: h = x @ w1 -> BatchNorm (one FMA) -> ReLU -> fused Linear (w2 @ w3)
# ---------------------------------------------------------------------------
def _head_kernel(x_ref, w1_ref, sum_ref, sq_ref, gamma_ref, beta_ref,
                 w23_ref, b23_ref, y_ref, *, inv_b):
    h = jnp.dot(x_ref[...], w1_ref[...], preferred_element_type=jnp.float32)

    # Training-mode BatchNorm with global batch statistics, folded into one FMA.
    mean = sum_ref[...] * inv_b                               # [1, H]
    var = jnp.maximum(sq_ref[...] * inv_b - mean * mean, 0.0)  # biased variance
    scale = gamma_ref[...] * lax.rsqrt(var + BN_EPS)          # rsqrt -> EUP slot
    shift = beta_ref[...] - mean * scale
    r = jnp.maximum(h * scale + shift, 0.0)                   # BN + ReLU

    # projection_head[-1] and fc fused into a single matmul.
    y = jnp.dot(r.astype(jnp.bfloat16), w23_ref[...],
                preferred_element_type=jnp.float32) + b23_ref[...]
    y_ref[...] = y.astype(y_ref.dtype)


@functools.partial(jax.jit, static_argnames=("tb",))
def phead_forward(x, params, tb=None):
    """Forward of Phead's head.  x: [B, dim_in] (stands in for net(x))."""
    B, dim_in = x.shape
    hidden = params["w1"].shape[1]
    dim_out = params["w3"].shape[1]
    out_dtype = x.dtype   # could be bf16 to halve output store bytes

    f32, bf16 = jnp.float32, jnp.bfloat16

    # ---- lane-friendly padding + one-time weight folding (outside kernels) ---
    di_p = _round_up(dim_in, LANE)
    h_p = _round_up(hidden, LANE)
    do_p = _round_up(dim_out, LANE)

    if tb is None:
        tb = min(128, _round_up(B, 8))
    tb = max(8, _round_up(tb, 8))
    b_p = _round_up(B, tb)
    nb = b_p // tb

    # w1: [dim_in, hidden] -> padded bf16.  params["b1"] is intentionally
    # unused: it cancels exactly under training-mode BatchNorm.
    w1_p = jnp.zeros((di_p, h_p), f32).at[:dim_in, :hidden].set(
        params["w1"]).astype(bf16)
    gamma_p = jnp.zeros((1, h_p), f32).at[:, :hidden].set(params["gamma"])
    beta_p = jnp.zeros((1, h_p), f32).at[:, :hidden].set(params["beta"])

    # Fold the last two Linears: y = (r @ w2 + b2) @ w3 + b3
    #                              = r @ (w2 @ w3) + (b2 @ w3 + b3)
    w23 = params["w2"] @ params["w3"]                         # [hidden, dim_out]
    b23 = params["b2"] @ params["w3"] + params["b3"]          # [1, dim_out]
    w23_p = jnp.zeros((h_p, do_p), f32).at[:hidden, :dim_out].set(w23).astype(bf16)
    b23_p = jnp.zeros((1, do_p), f32).at[:, :dim_out].set(b23)

    x_p = jnp.zeros((b_p, di_p), f32).at[:B, :dim_in].set(x).astype(bf16)

    # ---- pass 1: BN statistics (sequential accumulation over batch tiles) ----
    sums, sqs = pl.pallas_call(
        _stats_kernel,
        grid=(nb,),
        in_specs=[
            pl.BlockSpec((tb, di_p), lambda i: (i, 0)),        # x tile
            pl.BlockSpec((di_p, h_p), lambda i: (0, 0)),       # w1 (resident)
        ],
        out_specs=(
            pl.BlockSpec((1, h_p), lambda i: (0, 0)),          # sum  (resident)
            pl.BlockSpec((1, h_p), lambda i: (0, 0)),          # sumsq (resident)
        ),
        out_shape=(
            jax.ShapeDtypeStruct((1, h_p), f32),
            jax.ShapeDtypeStruct((1, h_p), f32),
        ),
        compiler_params=pltpu.CompilerParams(
            dimension_semantics=("arbitrary",)),   # accumulator -> sequential
    )(x_p, w1_p)

    # ---- pass 2: normalize + ReLU + fused matmul (independent batch tiles) ---
    kernel = functools.partial(_head_kernel, inv_b=1.0 / B)
    y_p = pl.pallas_call(
        kernel,
        grid=(nb,),
        in_specs=[
            pl.BlockSpec((tb, di_p), lambda i: (i, 0)),        # x tile
            pl.BlockSpec((di_p, h_p), lambda i: (0, 0)),       # w1
            pl.BlockSpec((1, h_p), lambda i: (0, 0)),          # sum
            pl.BlockSpec((1, h_p), lambda i: (0, 0)),          # sumsq
            pl.BlockSpec((1, h_p), lambda i: (0, 0)),          # gamma
            pl.BlockSpec((1, h_p), lambda i: (0, 0)),          # beta
            pl.BlockSpec((h_p, do_p), lambda i: (0, 0)),       # w23
            pl.BlockSpec((1, do_p), lambda i: (0, 0)),         # b23
        ],
        out_specs=pl.BlockSpec((tb, do_p), lambda i: (i, 0)),  # lane-dense y
        out_shape=jax.ShapeDtypeStruct((b_p, do_p), out_dtype),
        compiler_params=pltpu.CompilerParams(
            dimension_semantics=("parallel",)),    # megacore-shardable on v7x
    )(x_p, w1_p, sums, sqs, gamma_p, beta_p, w23_p, b23_p)

    return y_p[:B, :dim_out]


# ---------------------------------------------------------------------------
# Parameter init (PyTorch-style uniform bounds) and references
# ---------------------------------------------------------------------------
def init_params(key, dim_in, hidden_mlp, dim_feat, dim_out):
    ks = jax.random.split(key, 6)

    def linear(kw, kb, fan_in, fan_out):
        bound = 1.0 / jnp.sqrt(fan_in)
        w = jax.random.uniform(kw, (fan_in, fan_out), jnp.float32, -bound, bound)
        b = jax.random.uniform(kb, (1, fan_out), jnp.float32, -bound, bound)
        return w, b

    w1, b1 = linear(ks[0], ks[1], dim_in, hidden_mlp)
    w2, b2 = linear(ks[2], ks[3], hidden_mlp, dim_feat)
    w3, b3 = linear(ks[4], ks[5], dim_feat, dim_out)
    gamma = jnp.ones((1, hidden_mlp), jnp.float32)
    beta = jnp.zeros((1, hidden_mlp), jnp.float32)
    return dict(w1=w1, b1=b1, gamma=gamma, beta=beta,
                w2=w2, b2=b2, w3=w3, b3=b3)


def phead_reference(x, p):
    """Full-f32 reference matching the PyTorch module (training-mode BN)."""
    h = x @ p["w1"] + p["b1"]
    mean = jnp.mean(h, axis=0, keepdims=True)
    var = jnp.mean((h - mean) ** 2, axis=0, keepdims=True)
    h = (h - mean) / jnp.sqrt(var + BN_EPS) * p["gamma"] + p["beta"]
    h = jnp.maximum(h, 0.0)
    emb = h @ p["w2"] + p["b2"]
    return emb @ p["w3"] + p["b3"]


def phead_reference_matched(x, p):
    """Reference mirroring the kernel's (exact-algebra) precision choices."""
    bf16 = jnp.bfloat16
    h = jnp.dot(x.astype(bf16), p["w1"].astype(bf16),
                preferred_element_type=jnp.float32)
    mean = jnp.mean(h, axis=0, keepdims=True)
    var = jnp.maximum(jnp.mean(h * h, axis=0, keepdims=True) - mean * mean, 0.0)
    scale = p["gamma"] * lax.rsqrt(var + BN_EPS)
    shift = p["beta"] - mean * scale
    r = jnp.maximum(h * scale + shift, 0.0)
    w23 = (p["w2"] @ p["w3"]).astype(bf16)
    b23 = p["b2"] @ p["w3"] + p["b3"]
    return jnp.dot(r.astype(bf16), w23, preferred_element_type=jnp.float32) + b23


if __name__ == "__main__":
    # Small shapes consistent with the module (feat -> hidden -> feat -> logits).
    B, DIM_IN, HIDDEN, DIM_FEAT, DIM_OUT = 40, 32, 64, 16, 10

    key = jax.random.PRNGKey(0)
    kx, kp = jax.random.split(key)
    x = jax.random.normal(kx, (B, DIM_IN), jnp.float32)   # stands in for net(x)
    params = init_params(kp, DIM_IN, HIDDEN, DIM_FEAT, DIM_OUT)

    # tb=16 forces a multi-tile batch grid (3 tiles, padded batch) to exercise
    # the two-pass BatchNorm path.
    y = phead_forward(x, params, tb=16)
    y = jax.block_until_ready(y)
    assert y.shape == (B, DIM_OUT)

    y_matched = phead_reference_matched(x, params)
    y_f32 = phead_reference(x, params)

    # Tight check against a precision-matched reference (validates kernel logic).
    assert jnp.allclose(y, y_matched, atol=2e-3, rtol=2e-3), \
        float(jnp.max(jnp.abs(y - y_matched)))
    # Looser check against the full-f32 PyTorch-semantics reference (bf16 operands).
    assert jnp.allclose(y, y_f32, atol=3e-2, rtol=3e-2), \
        float(jnp.max(jnp.abs(y - y_f32)))

    print("KERNEL_OK")
</pallas_src>

<mosaic_0001>
module attributes {stable_mosaic.version = 11 : i64} {
  func.func @_stats_kernel(%arg0: i32, %arg1: memref<16x128xbf16, #tpu.memory_space<vmem>>, %arg2: memref<128x128xbf16, #tpu.memory_space<vmem>>, %arg3: memref<1x128xf32, #tpu.memory_space<vmem>>, %arg4: memref<1x128xf32, #tpu.memory_space<vmem>>) attributes {dimension_semantics = [#tpu.dimension_semantics<arbitrary>], iteration_bounds = array<i64: 3>, scalar_prefetch = 0 : i64, scratch_operands = 0 : i64, tpu.core_type = #tpu.core_type<tc>, window_params = [{transform_indices = @transform_0, window_bounds = array<i64: 16, 128>}, {pipeline_mode = #tpu.pipeline_mode<synchronous>, transform_indices = @transform_1, window_bounds = array<i64: 128, 128>}, {pipeline_mode = #tpu.pipeline_mode<synchronous>, transform_indices = @transform_2, window_bounds = array<i64: 1, 128>}, {pipeline_mode = #tpu.pipeline_mode<synchronous>, transform_indices = @transform_3, window_bounds = array<i64: 1, 128>}]} {
    %c0_i32 = arith.constant 0 : i32
    %0 = arith.cmpi eq, %arg0, %c0_i32 : i32
    %1 = arith.extui %0 : i1 to i32
    %c0_i32_0 = arith.constant 0 : i32
    %2 = arith.cmpi ne, %1, %c0_i32_0 : i32
    scf.if %2 {
      %cst_14 = arith.constant 0.000000e+00 : f32
      %17 = vector.broadcast %cst_14 : f32 to vector<1x128xf32>
      %c0_15 = arith.constant 0 : index
      %c0_16 = arith.constant 0 : index
      %18 = vector.load %arg3[%c0_15, %c0_16] : memref<1x128xf32, #tpu.memory_space<vmem>>, vector<1x128xf32>
      tpu.vector_store %arg3[%c0_15, %c0_16], %17 {strides = array<i32>} : memref<1x128xf32, #tpu.memory_space<vmem>>, vector<1x128xf32>,
      %cst_17 = arith.constant 0.000000e+00 : f32
      %19 = vector.broadcast %cst_17 : f32 to vector<1x128xf32>
      %c0_18 = arith.constant 0 : index
      %c0_19 = arith.constant 0 : index
      %20 = vector.load %arg4[%c0_18, %c0_19] : memref<1x128xf32, #tpu.memory_space<vmem>>, vector<1x128xf32>
      tpu.vector_store %arg4[%c0_18, %c0_19], %19 {strides = array<i32>} : memref<1x128xf32, #tpu.memory_space<vmem>>, vector<1x128xf32>,
    } else {
    }
    %c0 = arith.constant 0 : index
    %c0_1 = arith.constant 0 : index
    %3 = vector.load %arg1[%c0, %c0_1] : memref<16x128xbf16, #tpu.memory_space<vmem>>, vector<16x128xbf16>
    %c0_2 = arith.constant 0 : index
    %c0_3 = arith.constant 0 : index
    %4 = vector.load %arg2[%c0_2, %c0_3] : memref<128x128xbf16, #tpu.memory_space<vmem>>, vector<128x128xbf16>
    %cst = arith.constant dense<0.000000e+00> : vector<16x128xf32>
    %5 = tpu.matmul %3, %4, %cst {dimension_numbers = #tpu.dot_dimension_numbers<[1], [0], [0], [1], [0, 0, 1, 1], [], []>} : vector<16x128xbf16>, vector<128x128xbf16>, vector<16x128xf32> -> vector<16x128xf32>
    %c0_4 = arith.constant 0 : index
    %c0_5 = arith.constant 0 : index
    %6 = vector.load %arg3[%c0_4, %c0_5] : memref<1x128xf32, #tpu.memory_space<vmem>>, vector<1x128xf32>
    %cst_6 = arith.constant dense<0.000000e+00> : vector<128xf32>
    %7 = vector.multi_reduction <add>, %5, %cst_6 [0] : vector<16x128xf32> to vector<128xf32>
    %8 = vector.shape_cast %7 : vector<128xf32> to vector<1x128xf32>
    %9 = arith.addf %6, %8 : vector<1x128xf32>
    %c0_7 = arith.constant 0 : index
    %c0_8 = arith.constant 0 : index
    %10 = vector.load %arg3[%c0_7, %c0_8] : memref<1x128xf32, #tpu.memory_space<vmem>>, vector<1x128xf32>
    tpu.vector_store %arg3[%c0_7, %c0_8], %9 {strides = array<i32>} : memref<1x128xf32, #tpu.memory_space<vmem>>, vector<1x128xf32>,
    %c0_9 = arith.constant 0 : index
    %c0_10 = arith.constant 0 : index
    %11 = vector.load %arg4[%c0_9, %c0_10] : memref<1x128xf32, #tpu.memory_space<vmem>>, vector<1x128xf32>
    %12 = arith.mulf %5, %5 : vector<16x128xf32>
    %cst_11 = arith.constant dense<0.000000e+00> : vector<128xf32>
    %13 = vector.multi_reduction <add>, %12, %cst_11 [0] : vector<16x128xf32> to vector<128xf32>
    %14 = vector.shape_cast %13 : vector<128xf32> to vector<1x128xf32>
    %15 = arith.addf %11, %14 : vector<1x128xf32>
    %c0_12 = arith.constant 0 : index
    %c0_13 = arith.constant 0 : index
    %16 = vector.load %arg4[%c0_12, %c0_13] : memref<1x128xf32, #tpu.memory_space<vmem>>, vector<1x128xf32>
    tpu.vector_store %arg4[%c0_12, %c0_13], %15 {strides = array<i32>} : memref<1x128xf32, #tpu.memory_space<vmem>>, vector<1x128xf32>,
    return
  }
  func.func @transform_0(%arg0: i32) -> (i32, i32) {
    %c0_i32 = arith.constant 0 : i32
    %c0_i32_0 = arith.constant 0 : i32
    return %arg0, %c0_i32 : i32, i32
  }
  func.func @transform_1(%arg0: i32) -> (i32, i32) {
    %c0_i32 = arith.constant 0 : i32
    %c0_i32_0 = arith.constant 0 : i32
    %c0_i32_1 = arith.constant 0 : i32
    return %c0_i32, %c0_i32_0 : i32, i32
  }
  func.func @transform_2(%arg0: i32) -> (i32, i32) {
    %c0_i32 = arith.constant 0 : i32
    %c0_i32_0 = arith.constant 0 : i32
    %c0_i32_1 = arith.constant 0 : i32
    return %c0_i32, %c0_i32_0 : i32, i32
  }
  func.func @transform_3(%arg0: i32) -> (i32, i32) {
    %c0_i32 = arith.constant 0 : i32
    %c0_i32_0 = arith.constant 0 : i32
    %c0_i32_1 = arith.constant 0 : i32
    return %c0_i32, %c0_i32_0 : i32, i32
  }
}

module attributes {stable_mosaic.version = 11 : i64} {
  func.func @_head_kernel(%arg0: i32, %arg1: memref<16x128xbf16, #tpu.memory_space<vmem>>, %arg2: memref<128x128xbf16, #tpu.memory_space<vmem>>, %arg3: memref<1x128xf32, #tpu.memory_space<vmem>>, %arg4: memref<1x128xf32, #tpu.memory_space<vmem>>, %arg5: memref<1x128xf32, #tpu.memory_space<vmem>>, %arg6: memref<1x128xf32, #tpu.memory_space<vmem>>, %arg7: memref<128x128xbf16, #tpu.memory_space<vmem>>, %arg8: memref<1x128xf32, #tpu.memory_space<vmem>>, %arg9: memref<16x128xf32, #tpu.memory_space<vmem>>) attributes {dimension_semantics = [#tpu.dimension_semantics<parallel>], iteration_bounds = array<i64: 3>, scalar_prefetch = 0 : i64, scratch_operands = 0 : i64, tpu.core_type = #tpu.core_type<tc>, window_params = [{transform_indices = @transform_0, window_bounds = array<i64: 16, 128>}, {pipeline_mode = #tpu.pipeline_mode<synchronous>, transform_indices = @transform_1, window_bounds = array<i64: 128, 128>}, {pipeline_mode = #tpu.pipeline_mode<synchronous>, transform_indices = @transform_2, window_bounds = array<i64: 1, 128>}, {pipeline_mode = #tpu.pipeline_mode<synchronous>, transform_indices = @transform_3, window_bounds = array<i64: 1, 128>}, {pipeline_mode = #tpu.pipeline_mode<synchronous>, transform_indices = @transform_4, window_bounds = array<i64: 1, 128>}, {pipeline_mode = #tpu.pipeline_mode<synchronous>, transform_indices = @transform_5, window_bounds = array<i64: 1, 128>}, {pipeline_mode = #tpu.pipeline_mode<synchronous>, transform_indices = @transform_6, window_bounds = array<i64: 128, 128>}, {pipeline_mode = #tpu.pipeline_mode<synchronous>, transform_indices = @transform_7, window_bounds = array<i64: 1, 128>}, {transform_indices = @transform_8, window_bounds = array<i64: 16, 128>}]} {
    %c0 = arith.constant 0 : index
    %c0_0 = arith.constant 0 : index
    %0 = vector.load %arg1[%c0, %c0_0] : memref<16x128xbf16, #tpu.memory_space<vmem>>, vector<16x128xbf16>
    %c0_1 = arith.constant 0 : index
    %c0_2 = arith.constant 0 : index
    %1 = vector.load %arg2[%c0_1, %c0_2] : memref<128x128xbf16, #tpu.memory_space<vmem>>, vector<128x128xbf16>
    %cst = arith.constant dense<0.000000e+00> : vector<16x128xf32>
    %2 = tpu.matmul %0, %1, %cst {dimension_numbers = #tpu.dot_dimension_numbers<[1], [0], [0], [1], [0, 0, 1, 1], [], []>} : vector<16x128xbf16>, vector<128x128xbf16>, vector<16x128xf32> -> vector<16x128xf32>
    %c0_3 = arith.constant 0 : index
    %c0_4 = arith.constant 0 : index
    %3 = vector.load %arg3[%c0_3, %c0_4] : memref<1x128xf32, #tpu.memory_space<vmem>>, vector<1x128xf32>
    %cst_5 = arith.constant 2.500000e-02 : f32
    %4 = vector.broadcast %cst_5 : f32 to vector<1x128xf32>
    %5 = arith.mulf %3, %4 : vector<1x128xf32>
    %c0_6 = arith.constant 0 : index
    %c0_7 = arith.constant 0 : index
    %6 = vector.load %arg4[%c0_6, %c0_7] : memref<1x128xf32, #tpu.memory_space<vmem>>, vector<1x128xf32>
    %cst_8 = arith.constant 2.500000e-02 : f32
    %7 = vector.broadcast %cst_8 : f32 to vector<1x128xf32>
    %8 = arith.mulf %6, %7 : vector<1x128xf32>
    %9 = arith.mulf %5, %5 : vector<1x128xf32>
    %10 = arith.subf %8, %9 : vector<1x128xf32>
    %cst_9 = arith.constant 0.000000e+00 : f32
    %11 = vector.broadcast %cst_9 : f32 to vector<1x128xf32>
    %12 = arith.maximumf %10, %11 : vector<1x128xf32>
    %c0_10 = arith.constant 0 : index
    %c0_11 = arith.constant 0 : index
    %13 = vector.load %arg5[%c0_10, %c0_11] : memref<1x128xf32, #tpu.memory_space<vmem>>, vector<1x128xf32>
    %cst_12 = arith.constant 9.99999974E-6 : f32
    %14 = vector.broadcast %cst_12 : f32 to vector<1x128xf32>
    %15 = arith.addf %12, %14 : vector<1x128xf32>
    %16 = math.rsqrt %15 : vector<1x128xf32>
    %17 = arith.mulf %13, %16 : vector<1x128xf32>
    %c0_13 = arith.constant 0 : index
    %c0_14 = arith.constant 0 : index
    %18 = vector.load %arg6[%c0_13, %c0_14] : memref<1x128xf32, #tpu.memory_space<vmem>>, vector<1x128xf32>
    %19 = arith.mulf %5, %17 : vector<1x128xf32>
    %20 = arith.subf %18, %19 : vector<1x128xf32>
    %21 = vector.broadcast %17 : vector<1x128xf32> to vector<16x128xf32>
    %22 = arith.mulf %2, %21 : vector<16x128xf32>
    %23 = vector.broadcast %20 : vector<1x128xf32> to vector<16x128xf32>
    %24 = arith.addf %22, %23 : vector<16x128xf32>
    %cst_15 = arith.constant 0.000000e+00 : f32
    %25 = vector.broadcast %cst_15 : f32 to vector<16x128xf32>
    %26 = arith.maximumf %24, %25 : vector<16x128xf32>
    %27 = arith.truncf %26 : vector<16x128xf32> to vector<16x128xbf16>
    %c0_16 = arith.constant 0 : index
    %c0_17 = arith.constant 0 : index
    %28 = vector.load %arg7[%c0_16, %c0_17] : memref<128x128xbf16, #tpu.memory_space<vmem>>, vector<128x128xbf16>
    %cst_18 = arith.constant dense<0.000000e+00> : vector<16x128xf32>
    %29 = tpu.matmul %27, %28, %cst_18 {dimension_numbers = #tpu.dot_dimension_numbers<[1], [0], [0], [1], [0, 0, 1, 1], [], []>} : vector<16x128xbf16>, vector<128x128xbf16>, vector<16x128xf32> -> vector<16x128xf32>
    %c0_19 = arith.constant 0 : index
    %c0_20 = arith.constant 0 : index
    %30 = vector.load %arg8[%c0_19, %c0_20] : memref<1x128xf32, #tpu.memory_space<vmem>>, vector<1x128xf32>
    %31 = vector.broadcast %30 : vector<1x128xf32> to vector<16x128xf32>
    %32 = arith.addf %29, %31 : vector<16x128xf32>
    %c0_21 = arith.constant 0 : index
    %c0_22 = arith.constant 0 : index
    %33 = vector.load %arg9[%c0_21, %c0_22] : memref<16x128xf32, #tpu.memory_space<vmem>>, vector<16x128xf32>
    tpu.vector_store %arg9[%c0_21, %c0_22], %32 {strides = array<i32>} : memref<16x128xf32, #tpu.memory_space<vmem>>, vector<16x128xf32>,
    return
  }
  func.func @transform_0(%arg0: i32) -> (i32, i32) {
    %c0_i32 = arith.constant 0 : i32
    %c0_i32_0 = arith.constant 0 : i32
    return %arg0, %c0_i32 : i32, i32
  }
  func.func @transform_1(%arg0: i32) -> (i32, i32) {
    %c0_i32 = arith.constant 0 : i32
    %c0_i32_0 = arith.constant 0 : i32
    %c0_i32_1 = arith.constant 0 : i32
    return %c0_i32, %c0_i32_0 : i32, i32
  }
  func.func @transform_2(%arg0: i32) -> (i32, i32) {
    %c0_i32 = arith.constant 0 : i32
    %c0_i32_0 = arith.constant 0 : i32
    %c0_i32_1 = arith.constant 0 : i32
    return %c0_i32, %c0_i32_0 : i32, i32
  }
  func.func @transform_3(%arg0: i32) -> (i32, i32) {
    %c0_i32 = arith.constant 0 : i32
    %c0_i32_0 = arith.constant 0 : i32
    %c0_i32_1 = arith.constant 0 : i32
    return %c0_i32, %c0_i32_0 : i32, i32
  }
  func.func @transform_4(%arg0: i32) -> (i32, i32) {
    %c0_i32 = arith.constant 0 : i32
    %c0_i32_0 = arith.constant 0 : i32
    %c0_i32_1 = arith.constant 0 : i32
    return %c0_i32, %c0_i32_0 : i32, i32
  }
  func.func @transform_5(%arg0: i32) -> (i32, i32) {
    %c0_i32 = arith.constant 0 : i32
    %c0_i32_0 = arith.constant 0 : i32
    %c0_i32_1 = arith.constant 0 : i32
    return %c0_i32, %c0_i32_0 : i32, i32
  }
  func.func @transform_6(%arg0: i32) -> (i32, i32) {
    %c0_i32 = arith.constant 0 : i32
    %c0_i32_0 = arith.constant 0 : i32
    %c0_i32_1 = arith.constant 0 : i32
    return %c0_i32, %c0_i32_0 : i32, i32
  }
  func.func @transform_7(%arg0: i32) -> (i32, i32) {
    %c0_i32 = arith.constant 0 : i32
    %c0_i32_0 = arith.constant 0 : i32
    %c0_i32_1 = arith.constant 0 : i32
    return %c0_i32, %c0_i32_0 : i32, i32
  }
  func.func @transform_8(%arg0: i32) -> (i32, i32) {
    %c0_i32 = arith.constant 0 : i32
    %c0_i32_0 = arith.constant 0 : i32
    return %arg0, %c0_i32 : i32, i32
  }
}

</mosaic_0001>

<llo_original>
// kernel: phead_forward.2
$region0: #{phead_forward.2}
  #allocation0 [shape = 'u32[]', space=smem, size = 0x4, offset = 0x4, fixed_abs, tag = 'smem constant byte address 0x4 - core index']
  #allocation1 [shape = 'u32[72,128]{1,0:T(1,128)}', space=vmem, size = 0x9000, scoped, tag = 'internal scratch']
  %s0 = inlined_call_operand.vmem [shape: bf16[48,128], index: 0, kind: input, shape index: {}]
  %s1 = inlined_call_operand.vmem [shape: bf16[128,128], index: 1, kind: input, shape index: {}]
  %s2 = inlined_call_operand.vmem [shape: f32[1,128], index: 2, kind: output, shape index: {0}]
  %s3 = inlined_call_operand.vmem [shape: f32[1,128], index: 3, kind: output, shape index: {1}]
  %4 = xla_tuple %s2, %s3
  %s5 = sld [smem:[#allocation0]]
  $region53: #{phead_forward.2} parent=0
    _
  %s7 = ssub.s32 1, %s5
  %s8 = scalar_select 0, %s7, %s5
  loop: start=0, step=1, limit=5
  $region2: #{phead_forward.2} parent=0 // loop_pre_header
    _
  $region3: #{phead_forward.2} parent=0 // loop_header
    %s10 = sphi 0, %s14
    %p11 = scmp.ge.s32.totalorder %s10, 5
    %s20 = sphi 0, %s22
    %s23 = sphi 0, %s20
    %s24 = sphi 0, %s23
    %s40 = sphi 0, %s24
    %s44 = sphi 0, %s44
    %s46 = sphi 0, %s44
    %s47 = sphi 0, %s46
    %s61 = sphi 0, %s47
    %s65 = sphi 0, %s65
    %s67 = sphi 0, %s65
    %s68 = sphi 0, %s67
    %s82 = sphi 0, %s68
    %s86 = sphi 0, %s86
    %s88 = sphi 0, %s86
    %s89 = sphi 0, %s88
    %s103 = sphi 0, %s89
  $region4: #{phead_forward.2} parent=0 // loop_header_branch
    %13 = sbr.rel (%p11) target = $region8
  $region5: #{phead_forward.2} parent=0 // loop_body
    %s15 = ssub.s32 %s10, 1
    %s16 = ssub.s32 %s10, 2
    %s17 = sadd.s32 %s10, 1
    %s18 = ssub.s32 %s10, %s17
    %p19 = scmp.eq.s32.totalorder %s18, 0
    %s21 = sadd.s32 %s20, 1
    %s22 = scalar_select %p19, %s20, %s21
    %p25 = pneg %p19
    %p26 = scmp.eq.s32.totalorder %s10, 2
    %p27 = por %p25, %p26
    %p28 = scmp.ne.s32.totalorder %s20, %s23
    %p29 = scmp.eq.s32.totalorder %s10, 0
    %p30 = por %p28, %p29
    %p31 = scmp.ne.s32.totalorder %s20, %s23
    %p32 = scmp.eq.s32.totalorder %s15, 2
    %p33 = por %p31, %p32
    %p34 = scmp.ne.s32.totalorder %s23, %s24
    %p35 = scmp.eq.s32.totalorder %s15, 0
    %p36 = por %p34, %p35
    %p37 = scmp.ne.s32.totalorder %s23, %s24
    %p38 = scmp.eq.s32.totalorder %s16, 2
    %p39 = por %p37, %p38
    %p41 = scmp.ne.s32.totalorder %s24, %s40
    %p42 = scmp.eq.s32.totalorder %s16, 0
    %p43 = por %p41, %p42
    %s45 = sadd.s32 %s44, 1
    %p48 = scmp.eq.s32.totalorder %s10, 2
    %p49 = scmp.ne.s32.totalorder %s44, %s46
    %p50 = scmp.eq.s32.totalorder %s10, 0
    %p51 = por %p49, %p50
    %p52 = scmp.ne.s32.totalorder %s44, %s46
    %p53 = scmp.eq.s32.totalorder %s15, 2
    %p54 = por %p52, %p53
    %p55 = scmp.ne.s32.totalorder %s46, %s47
    %p56 = scmp.eq.s32.totalorder %s15, 0
    %p57 = por %p55, %p56
    %p58 = scmp.ne.s32.totalorder %s46, %s47
    %p59 = scmp.eq.s32.totalorder %s16, 2
    %p60 = por %p58, %p59
    %p62 = scmp.ne.s32.totalorder %s47, %s61
    %p63 = scmp.eq.s32.totalorder %s16, 0
    %p64 = por %p62, %p63
    %s66 = sadd.s32 %s65, 1
    %p69 = scmp.eq.s32.totalorder %s10, 2
    %p70 = scmp.ne.s32.totalorder %s65, %s67
    %p71 = scmp.eq.s32.totalorder %s10, 0
    %p72 = por %p70, %p71
    %p73 = scmp.ne.s32.totalorder %s65, %s67
    %p74 = scmp.eq.s32.totalorder %s15, 2
    %p75 = por %p73, %p74
    %p76 = scmp.ne.s32.totalorder %s67, %s68
    %p77 = scmp.eq.s32.totalorder %s15, 0
    %p78 = por %p76, %p77
    %p79 = scmp.ne.s32.totalorder %s67, %s68
    %p80 = scmp.eq.s32.totalorder %s16, 2
    %p81 = por %p79, %p80
    %p83 = scmp.ne.s32.totalorder %s68, %s82
    %p84 = scmp.eq.s32.totalorder %s16, 0
    %p85 = por %p83, %p84
    %s87 = sadd.s32 %s86, 1
    %p90 = scmp.eq.s32.totalorder %s10, 2
    %p91 = scmp.ne.s32.totalorder %s86, %s88
    %p92 = scmp.eq.s32.totalorder %s10, 0
    %p93 = por %p91, %p92
    %p94 = scmp.ne.s32.totalorder %s86, %s88
    %p95 = scmp.eq.s32.totalorder %s15, 2
    %p96 = por %p94, %p95
    %p97 = scmp.ne.s32.totalorder %s88, %s89
    %p98 = scmp.eq.s32.totalorder %s15, 0
    %p99 = por %p97, %p98
    %p100 = scmp.ne.s32.totalorder %s88, %s89
    %p101 = scmp.eq.s32.totalorder %s16, 2
    %p102 = por %p100, %p101
    %p104 = scmp.ne.s32.totalorder %s89, %s103
    %p105 = scmp.eq.s32.totalorder %s16, 0
    %p106 = por %p104, %p105
    %p107 = scmp.le.s32.totalorder 1, %s10
    %p108 = scmp.lt.s32.totalorder %s10, 4
    %p109 = pnand %p107, %p108
    %p110 = pneg %p109
    // Predicated region
    $region9: #{phead_forward.2} parent=5 // pred_check
      _
    $region10: #{phead_forward.2} parent=5 // pred_check_branch
      %112 = sbr.rel (%p109) target = $region12
    $region11: #{phead_forward.2} parent=5 // pred_region
      %s113 = ssub.s32 %s10, 1
      // Predicated region
      $region13: #{phead_forward.2} parent=11 // pred_check
        %p114 = pneg %p57
      $region14: #{phead_forward.2} parent=11 // pred_check_branch
        %116 = sbr.rel (%p114) target = $region16
      $region15: #{phead_forward.2} parent=11 // pred_region
        _
      $region16: #{phead_forward.2} parent=11 // pred_fallthru
        _
    $region12: #{phead_forward.2} parent=5 // pred_fallthru
      _
    %p117 = scmp.lt.s32.totalorder %s10, 3
    // Predicated region
    $region17: #{phead_forward.2} parent=5 // pred_check
      %p118 = pneg %p117
    $region18: #{phead_forward.2} parent=5 // pred_check_branch
      %120 = sbr.rel (%p118) target = $region20
    $region19: #{phead_forward.2} parent=5 // pred_region
      // Predicated region
      $region21: #{phead_forward.2} parent=19 // pred_check
        %p121 = pneg %p30
      $region22: #{phead_forward.2} parent=19 // pred_check_branch
        %123 = sbr.rel (%p121) target = $region24
      $region23: #{phead_forward.2} parent=19 // pred_region
        %s124 = smul.u32 2, %s10
        %p125 = scmp.lt.s32.totalorder %s124, 5
        %s126 = scalar_select %p125, %s124, 5
        %s127 = smul.addr %s126, 4
        %s128 = scalar_lea.vmem %s0, %s127
        %s129 = smul.u32 2, %s10
      $region24: #{phead_forward.2} parent=19 // pred_fallthru
        _
    $region20: #{phead_forward.2} parent=5 // pred_fallthru
      _
    %p130 = scmp.le.s32.totalorder 1, %s10
    %p131 = scmp.lt.s32.totalorder %s10, 4
    %p132 = pnand %p130, %p131
    %p133 = pneg %p132
    // Predicated region
    $region25: #{phead_forward.2} parent=5 // pred_check
      _
    $region26: #{phead_forward.2} parent=5 // pred_check_branch
      %135 = sbr.rel (%p132) target = $region28
    $region27: #{phead_forward.2} parent=5 // pred_region
      %s136 = ssub.s32 %s10, 1
      %s137 = smul.u32 2, %s15
      %p138 = scmp.lt.s32.totalorder %s137, 5
      %s139 = scalar_select %p138, %s137, 5
      %s140 = smul.addr %s139, 4
      %s141 = scalar_lea.vmem %s0, %s140
      %p142 = pneg %p36
      %p143 = pneg %p33
      %p144 = pneg %p57
      %p145 = pneg %p54
      %p146 = pneg %p78
      %p147 = pneg %p75
      %p148 = pneg %p99
      %p149 = pneg %p96
      %s150 = smul.u32 2, %s15
      %p151 = scmp.lt.s32.totalorder %s150, 5
      %s152 = scalar_select %p151, %s150, 5
      %s153 = smul.addr %s152, 4
      %s154 = scalar_lea.vmem %s0, %s153
      %s155 = smul.u32 2, %s15
      %p156 = scmp.eq.s32.totalorder %s15, 0
      // Predicated region
      $region29: #{phead_forward.2} parent=27 // pred_check
        %p157 = pneg %p156
      $region30: #{phead_forward.2} parent=27 // pred_check_branch
        %159 = sbr.rel (%p157) target = $region32
      $region31: #{phead_forward.2} parent=27 // pred_region
        %160 = vst [vmem:[%s2] sm:$0x1] 0.0
        %161 = vst [vmem:[%s3] sm:$0x1] 0.0
      $region32: #{phead_forward.2} parent=27 // pred_fallthru
        _
      %v162 = vld [vmem:[%s154] sm:$0xf]
      %v163 = vld [vmem:[%s154 + $0x4] sm:$0xf]
      %v164 = vld [vmem:[%s1] sm:$0xf]
      %v165 = vld [vmem:[%s1 + $0x4] sm:$0xf]
      %v166 = vld [vmem:[%s1 + $0x8] sm:$0xf]
      %v167 = vld [vmem:[%s1 + $0xc] sm:$0xf]
      %v168 = vld [vmem:[%s1 + $0x10] sm:$0xf]
      %v169 = vld [vmem:[%s1 + $0x14] sm:$0xf]
      %v170 = vld [vmem:[%s1 + $0x18] sm:$0xf]
      %v171 = vld [vmem:[%s1 + $0x1c] sm:$0xf]
      %v172 = vld [vmem:[%s1 + $0x20] sm:$0xf]
      %v173 = vld [vmem:[%s1 + $0x24] sm:$0xf]
      %v174 = vld [vmem:[%s1 + $0x28] sm:$0xf]
      %v175 = vld [vmem:[%s1 + $0x2c] sm:$0xf]
      %v176 = vld [vmem:[%s1 + $0x30] sm:$0xf]
      %v177 = vld [vmem:[%s1 + $0x34] sm:$0xf]
      %v178 = vld [vmem:[%s1 + $0x38] sm:$0xf]
      %v179 = vld [vmem:[%s1 + $0x3c] sm:$0xf]
      %v182 = vunpack.c.l.b16 %v162
      %v183 = vunpack.c.l.b16 %v163
      %v184 = vpack.c.b16 %v183, %v182
      %v202 = vunpack.c.l.b16 %v164
      %v203 = vunpack.c.l.b16 %v165
      %v204 = vunpack.c.l.b16 %v166
      %v205 = vunpack.c.l.b16 %v167
      %v206 = vunpack.c.l.b16 %v168
      %v207 = vunpack.c.l.b16 %v169
      %v208 = vunpack.c.l.b16 %v170
      %v209 = vunpack.c.l.b16 %v171
      %v210 = vunpack.c.l.b16 %v172
      %v211 = vunpack.c.l.b16 %v173
      %v212 = vunpack.c.l.b16 %v174
      %v213 = vunpack.c.l.b16 %v175
      %v214 = vunpack.c.l.b16 %v176
      %v215 = vunpack.c.l.b16 %v177
      %v216 = vunpack.c.l.b16 %v178
      %v217 = vunpack.c.l.b16 %v179
      %v218 = vpack.c.b16 %v203, %v202
      %v219 = vpack.c.b16 %v205, %v204
      %v220 = vpack.c.b16 %v207, %v206
      %v221 = vpack.c.b16 %v209, %v208
      %v222 = vpack.c.b16 %v211, %v210
      %v223 = vpack.c.b16 %v213, %v212
      %v224 = vpack.c.b16 %v215, %v214
      %v225 = vpack.c.b16 %v217, %v216
      %234 = vmatpush.bf16.msra.mxu0 %v225
      %235 = vmatpush.bf16.msra.mxu0 %v224
      %236 = vmatpush.bf16.msra.mxu0 %v223
      %237 = vmatpush.bf16.msra.mxu0 %v222
      %238 = vmatpush.bf16.msra.mxu0 %v221
      %239 = vmatpush.bf16.msra.mxu0 %v220
      %240 = vmatpush.bf16.msra.mxu0 %v219
      %241 = vmatpush.bf16.msra.mxu0 %v218
      %242 = vmatmul.bf16.gmra.mxu0 %v184
      %v243 = vpop.f32.mrf.mxu0
      %v244 = vadd.f32 0.0, %v243
      %v245 = vpop.f32.mrf.mxu0
      %v246 = vadd.f32 0.0, %v245
      %247 = vdwg.mxu0
      %v248 = vld [vmem:[%s2] sm:$0x1]
      %v249 = vadd.f32 %v244, %v246
      %v250 = vrot.slane %v249, 4
      %v251 = vadd.f32 %v249, %v250
      %v252 = vrot.slane %v251, 2
      %v253 = vadd.f32 %v251, %v252
      %v254 = vrot.slane %v253, 1
      %v255 = vadd.f32 %v253, %v254
      %v256 = vadd.f32 %v248, %v255
      %257 = vst [vmem:[%s2] sm:$0x1] %v256
      %v258 = vld [vmem:[%s3] sm:$0x1]
      %v259 = vmul.f32 %v244, %v244
      %v260 = vmul.f32 %v246, %v246
      %v261 = vadd.f32 %v259, %v260
      %v262 = vrot.slane %v261, 4
      %v263 = vadd.f32 %v261, %v262
      %v264 = vrot.slane %v263, 2
      %v265 = vadd.f32 %v263, %v264
      %v266 = vrot.slane %v265, 1
      %v267 = vadd.f32 %v265, %v266
      %v268 = vadd.f32 %v258, %v267
      %269 = vst [vmem:[%s3] sm:$0x1] %v268
      // Predicated region
      $region33: #{phead_forward.2} parent=27 // pred_check
        %p270 = pneg %p75
      $region34: #{phead_forward.2} parent=27 // pred_check_branch
        %272 = sbr.rel (%p270) target = $region36
      $region35: #{phead_forward.2} parent=27 // pred_region
        _
      $region36: #{phead_forward.2} parent=27 // pred_fallthru
        _
      // Predicated region
      $region37: #{phead_forward.2} parent=27 // pred_check
        %p273 = pneg %p96
      $region38: #{phead_forward.2} parent=27 // pred_check_branch
        %275 = sbr.rel (%p273) target = $region40
      $region39: #{phead_forward.2} parent=27 // pred_region
        _
      $region40: #{phead_forward.2} parent=27 // pred_fallthru
        _
      // Predicated region
      $region41: #{phead_forward.2} parent=27 // pred_check
        %p276 = pneg %p75
      $region42: #{phead_forward.2} parent=27 // pred_check_branch
        %278 = sbr.rel (%p276) target = $region44
      $region43: #{phead_forward.2} parent=27 // pred_region
        _
      $region44: #{phead_forward.2} parent=27 // pred_fallthru
        _
      // Predicated region
      $region45: #{phead_forward.2} parent=27 // pred_check
        %p279 = pneg %p96
      $region46: #{phead_forward.2} parent=27 // pred_check_branch
        %281 = sbr.rel (%p279) target = $region48
      $region47: #{phead_forward.2} parent=27 // pred_region
        _
      $region48: #{phead_forward.2} parent=27 // pred_fallthru
        _
    $region28: #{phead_forward.2} parent=5 // pred_fallthru
      _
    %p282 = scmp.le.s32.totalorder 2, %s10
    // Predicated region
    $region49: #{phead_forward.2} parent=5 // pred_check
      %p283 = pneg %p282
    $region50: #{phead_forward.2} parent=5 // pred_check_branch
      %285 = sbr.rel (%p283) target = $region52
    $region51: #{phead_forward.2} parent=5 // pred_region
      %s286 = ssub.s32 %s10, 2
    $region52: #{phead_forward.2} parent=5 // pred_fallthru
      _
  $region6: #{phead_forward.2} parent=0 // loop_footer
    %s14 = sadd.s32 1, %s10
  $region7: #{phead_forward.2} parent=0 // loop_footer_branch
    %9 = sbr.rel target = $region3
  $region8: #{phead_forward.2} parent=0 // loop_exit
    _

// kernel: phead_forward.3
$region0: #{phead_forward.3}
  #allocation0 [shape = 'u32[]', space=smem, size = 0x4, offset = 0x4, fixed_abs, tag = 'smem constant byte address 0x4 - core index']
  #allocation1 [shape = 'u32[72,128]{1,0:T(1,128)}', space=vmem, size = 0x9000, scoped, tag = 'internal scratch']
  %s0 = inlined_call_operand.vmem [shape: bf16[48,128], index: 0, kind: input, shape index: {}]
  %s1 = inlined_call_operand.vmem [shape: bf16[128,128], index: 1, kind: input, shape index: {}]
  %s2 = inlined_call_operand.vmem [shape: f32[1,128], index: 2, kind: input, shape index: {}]
  %s3 = inlined_call_operand.vmem [shape: f32[1,128], index: 3, kind: input, shape index: {}]
  %s4 = inlined_call_operand.vmem [shape: f32[1,128], index: 4, kind: input, shape index: {}]
  %s5 = inlined_call_operand.vmem [shape: f32[1,128], index: 5, kind: input, shape index: {}]
  %s6 = inlined_call_operand.vmem [shape: bf16[128,128], index: 6, kind: input, shape index: {}]
  %s7 = inlined_call_operand.vmem [shape: f32[1,128], index: 7, kind: input, shape index: {}]
  %s8 = inlined_call_operand.vmem [shape: f32[48,128], index: 8, kind: output, shape index: {}]
  %s9 = sld [smem:[#allocation0]]
  $region65: #{phead_forward.3} parent=0
    _
  %s11 = ssub.s32 1, %s9
  %s12 = scalar_select 0, %s11, %s9
  loop: start=0, step=1, limit=5
  $region2: #{phead_forward.3} parent=0 // loop_pre_header
    _
  $region3: #{phead_forward.3} parent=0 // loop_header
    %s14 = sphi 0, %s18
    %p15 = scmp.ge.s32.totalorder %s14, 5
    %s24 = sphi 0, %s26
    %s27 = sphi 0, %s24
    %s28 = sphi 0, %s27
    %s44 = sphi 0, %s28
    %s48 = sphi 0, %s48
    %s50 = sphi 0, %s48
    %s51 = sphi 0, %s50
    %s65 = sphi 0, %s51
    %s69 = sphi 0, %s69
    %s71 = sphi 0, %s69
    %s72 = sphi 0, %s71
    %s86 = sphi 0, %s72
    %s90 = sphi 0, %s90
    %s92 = sphi 0, %s90
    %s93 = sphi 0, %s92
    %s107 = sphi 0, %s93
    %s111 = sphi 0, %s111
    %s113 = sphi 0, %s111
    %s114 = sphi 0, %s113
    %s128 = sphi 0, %s114
    %s132 = sphi 0, %s132
    %s134 = sphi 0, %s132
    %s135 = sphi 0, %s134
    %s149 = sphi 0, %s135
    %s153 = sphi 0, %s153
    %s155 = sphi 0, %s153
    %s156 = sphi 0, %s155
    %s170 = sphi 0, %s156
    %s174 = sphi 0, %s174
    %s176 = sphi 0, %s174
    %s177 = sphi 0, %s176
    %s191 = sphi 0, %s177
    %s197 = sphi 0, %s199
    %s200 = sphi 0, %s197
    %s201 = sphi 0, %s200
    %s217 = sphi 0, %s201
  $region4: #{phead_forward.3} parent=0 // loop_header_branch
    %17 = sbr.rel (%p15) target = $region8
  $region5: #{phead_forward.3} parent=0 // loop_body
    %s19 = ssub.s32 %s14, 1
    %s20 = ssub.s32 %s14, 2
    %s21 = sadd.s32 %s14, 1
    %s22 = ssub.s32 %s14, %s21
    %p23 = scmp.eq.s32.totalorder %s22, 0
    %s25 = sadd.s32 %s24, 1
    %s26 = scalar_select %p23, %s24, %s25
    %p29 = pneg %p23
    %p30 = scmp.eq.s32.totalorder %s14, 2
    %p31 = por %p29, %p30
    %p32 = scmp.ne.s32.totalorder %s24, %s27
    %p33 = scmp.eq.s32.totalorder %s14, 0
    %p34 = por %p32, %p33
    %p35 = scmp.ne.s32.totalorder %s24, %s27
    %p36 = scmp.eq.s32.totalorder %s19, 2
    %p37 = por %p35, %p36
    %p38 = scmp.ne.s32.totalorder %s27, %s28
    %p39 = scmp.eq.s32.totalorder %s19, 0
    %p40 = por %p38, %p39
    %p41 = scmp.ne.s32.totalorder %s27, %s28
    %p42 = scmp.eq.s32.totalorder %s20, 2
    %p43 = por %p41, %p42
    %p45 = scmp.ne.s32.totalorder %s28, %s44
    %p46 = scmp.eq.s32.totalorder %s20, 0
    %p47 = por %p45, %p46
    %s49 = sadd.s32 %s48, 1
    %p52 = scmp.eq.s32.totalorder %s14, 2
    %p53 = scmp.ne.s32.totalorder %s48, %s50
    %p54 = scmp.eq.s32.totalorder %s14, 0
    %p55 = por %p53, %p54
    %p56 = scmp.ne.s32.totalorder %s48, %s50
    %p57 = scmp.eq.s32.totalorder %s19, 2
    %p58 = por %p56, %p57
    %p59 = scmp.ne.s32.totalorder %s50, %s51
    %p60 = scmp.eq.s32.totalorder %s19, 0
    %p61 = por %p59, %p60
    %p62 = scmp.ne.s32.totalorder %s50, %s51
    %p63 = scmp.eq.s32.totalorder %s20, 2
    %p64 = por %p62, %p63
    %p66 = scmp.ne.s32.totalorder %s51, %s65
    %p67 = scmp.eq.s32.totalorder %s20, 0
    %p68 = por %p66, %p67
    %s70 = sadd.s32 %s69, 1
    %p73 = scmp.eq.s32.totalorder %s14, 2
    %p74 = scmp.ne.s32.totalorder %s69, %s71
    %p75 = scmp.eq.s32.totalorder %s14, 0
    %p76 = por %p74, %p75
    %p77 = scmp.ne.s32.totalorder %s69, %s71
    %p78 = scmp.eq.s32.totalorder %s19, 2
    %p79 = por %p77, %p78
    %p80 = scmp.ne.s32.totalorder %s71, %s72
    %p81 = scmp.eq.s32.totalorder %s19, 0
    %p82 = por %p80, %p81
    %p83 = scmp.ne.s32.totalorder %s71, %s72
    %p84 = scmp.eq.s32.totalorder %s20, 2
    %p85 = por %p83, %p84
    %p87 = scmp.ne.s32.totalorder %s72, %s86
    %p88 = scmp.eq.s32.totalorder %s20, 0
    %p89 = por %p87, %p88
    %s91 = sadd.s32 %s90, 1
    %p94 = scmp.eq.s32.totalorder %s14, 2
    %p95 = scmp.ne.s32.totalorder %s90, %s92
    %p96 = scmp.eq.s32.totalorder %s14, 0
    %p97 = por %p95, %p96
    %p98 = scmp.ne.s32.totalorder %s90, %s92
    %p99 = scmp.eq.s32.totalorder %s19, 2
    %p100 = por %p98, %p99
    %p101 = scmp.ne.s32.totalorder %s92, %s93
    %p102 = scmp.eq.s32.totalorder %s19, 0
    %p103 = por %p101, %p102
    %p104 = scmp.ne.s32.totalorder %s92, %s93
    %p105 = scmp.eq.s32.totalorder %s20, 2
    %p106 = por %p104, %p105
    %p108 = scmp.ne.s32.totalorder %s93, %s107
    %p109 = scmp.eq.s32.totalorder %s20, 0
    %p110 = por %p108, %p109
    %s112 = sadd.s32 %s111, 1
    %p115 = scmp.eq.s32.totalorder %s14, 2
    %p116 = scmp.ne.s32.totalorder %s111, %s113
    %p117 = scmp.eq.s32.totalorder %s14, 0
    %p118 = por %p116, %p117
    %p119 = scmp.ne.s32.totalorder %s111, %s113
    %p120 = scmp.eq.s32.totalorder %s19, 2
    %p121 = por %p119, %p120
    %p122 = scmp.ne.s32.totalorder %s113, %s114
    %p123 = scmp.eq.s32.totalorder %s19, 0
    %p124 = por %p122, %p123
    %p125 = scmp.ne.s32.totalorder %s113, %s114
    %p126 = scmp.eq.s32.totalorder %s20, 2
    %p127 = por %p125, %p126
    %p129 = scmp.ne.s32.totalorder %s114, %s128
    %p130 = scmp.eq.s32.totalorder %s20, 0
    %p131 = por %p129, %p130
    %s133 = sadd.s32 %s132, 1
    %p136 = scmp.eq.s32.totalorder %s14, 2
    %p137 = scmp.ne.s32.totalorder %s132, %s134
    %p138 = scmp.eq.s32.totalorder %s14, 0
    %p139 = por %p137, %p138
    %p140 = scmp.ne.s32.totalorder %s132, %s134
    %p141 = scmp.eq.s32.totalorder %s19, 2
    %p142 = por %p140, %p141
    %p143 = scmp.ne.s32.totalorder %s134, %s135
    %p144 = scmp.eq.s32.totalorder %s19, 0
    %p145 = por %p143, %p144
    %p146 = scmp.ne.s32.totalorder %s134, %s135
    %p147 = scmp.eq.s32.totalorder %s20, 2
    %p148 = por %p146, %p147
    %p150 = scmp.ne.s32.totalorder %s135, %s149
    %p151 = scmp.eq.s32.totalorder %s20, 0
    %p152 = por %p150, %p151
    %s154 = sadd.s32 %s153, 1
    %p157 = scmp.eq.s32.totalorder %s14, 2
    %p158 = scmp.ne.s32.totalorder %s153, %s155
    %p159 = scmp.eq.s32.totalorder %s14, 0
    %p160 = por %p158, %p159
    %p161 = scmp.ne.s32.totalorder %s153, %s155
    %p162 = scmp.eq.s32.totalorder %s19, 2
    %p163 = por %p161, %p162
    %p164 = scmp.ne.s32.totalorder %s155, %s156
    %p165 = scmp.eq.s32.totalorder %s19, 0
    %p166 = por %p164, %p165
    %p167 = scmp.ne.s32.totalorder %s155, %s156
    %p168 = scmp.eq.s32.totalorder %s20, 2
    %p169 = por %p167, %p168
    %p171 = scmp.ne.s32.totalorder %s156, %s170
    %p172 = scmp.eq.s32.totalorder %s20, 0
    %p173 = por %p171, %p172
    %s175 = sadd.s32 %s174, 1
    %p178 = scmp.eq.s32.totalorder %s14, 2
    %p179 = scmp.ne.s32.totalorder %s174, %s176
    %p180 = scmp.eq.s32.totalorder %s14, 0
    %p181 = por %p179, %p180
    %p182 = scmp.ne.s32.totalorder %s174, %s176
    %p183 = scmp.eq.s32.totalorder %s19, 2
    %p184 = por %p182, %p183
    %p185 = scmp.ne.s32.totalorder %s176, %s177
    %p186 = scmp.eq.s32.totalorder %s19, 0
    %p187 = por %p185, %p186
    %p188 = scmp.ne.s32.totalorder %s176, %s177
    %p189 = scmp.eq.s32.totalorder %s20, 2
    %p190 = por %p188, %p189
    %p192 = scmp.ne.s32.totalorder %s177, %s191
    %p193 = scmp.eq.s32.totalorder %s20, 0
    %p194 = por %p192, %p193
    %s195 = ssub.s32 %s14, %s21
    %p196 = scmp.eq.s32.totalorder %s195, 0
    %s198 = sadd.s32 %s197, 1
    %s199 = scalar_select %p196, %s197, %s198
    %p202 = pneg %p196
    %p203 = scmp.eq.s32.totalorder %s14, 2
    %p204 = por %p202, %p203
    %p205 = scmp.ne.s32.totalorder %s197, %s200
    %p206 = scmp.eq.s32.totalorder %s14, 0
    %p207 = por %p205, %p206
    %p208 = scmp.ne.s32.totalorder %s197, %s200
    %p209 = scmp.eq.s32.totalorder %s19, 2
    %p210 = por %p208, %p209
    %p211 = scmp.ne.s32.totalorder %s200, %s201
    %p212 = scmp.eq.s32.totalorder %s19, 0
    %p213 = por %p211, %p212
    %p214 = scmp.ne.s32.totalorder %s200, %s201
    %p215 = scmp.eq.s32.totalorder %s20, 2
    %p216 = por %p214, %p215
    %p218 = scmp.ne.s32.totalorder %s201, %s217
    %p219 = scmp.eq.s32.totalorder %s20, 0
    %p220 = por %p218, %p219
    %p221 = scmp.le.s32.totalorder 1, %s14
    %p222 = scmp.lt.s32.totalorder %s14, 4
    %p223 = pnand %p221, %p222
    %p224 = pneg %p223
    // Predicated region
    $region9: #{phead_forward.3} parent=5 // pred_check
      _
    $region10: #{phead_forward.3} parent=5 // pred_check_branch
      %226 = sbr.rel (%p223) target = $region12
    $region11: #{phead_forward.3} parent=5 // pred_region
      %s227 = ssub.s32 %s14, 1
      // Predicated region
      $region13: #{phead_forward.3} parent=11 // pred_check
        %p228 = pneg %p61
      $region14: #{phead_forward.3} parent=11 // pred_check_branch
        %230 = sbr.rel (%p228) target = $region16
      $region15: #{phead_forward.3} parent=11 // pred_region
        _
      $region16: #{phead_forward.3} parent=11 // pred_fallthru
        _
      // Predicated region
      $region17: #{phead_forward.3} parent=11 // pred_check
        %p231 = pneg %p82
      $region18: #{phead_forward.3} parent=11 // pred_check_branch
        %233 = sbr.rel (%p231) target = $region20
      $region19: #{phead_forward.3} parent=11 // pred_region
        _
      $region20: #{phead_forward.3} parent=11 // pred_fallthru
        _
      // Predicated region
      $region21: #{phead_forward.3} parent=11 // pred_check
        %p234 = pneg %p103
      $region22: #{phead_forward.3} parent=11 // pred_check_branch
        %236 = sbr.rel (%p234) target = $region24
      $region23: #{phead_forward.3} parent=11 // pred_region
        _
      $region24: #{phead_forward.3} parent=11 // pred_fallthru
        _
      // Predicated region
      $region25: #{phead_forward.3} parent=11 // pred_check
        %p237 = pneg %p124
      $region26: #{phead_forward.3} parent=11 // pred_check_branch
        %239 = sbr.rel (%p237) target = $region28
      $region27: #{phead_forward.3} parent=11 // pred_region
        _
      $region28: #{phead_forward.3} parent=11 // pred_fallthru
        _
      // Predicated region
      $region29: #{phead_forward.3} parent=11 // pred_check
        %p240 = pneg %p145
      $region30: #{phead_forward.3} parent=11 // pred_check_branch
        %242 = sbr.rel (%p240) target = $region32
      $region31: #{phead_forward.3} parent=11 // pred_region
        _
      $region32: #{phead_forward.3} parent=11 // pred_fallthru
        _
      // Predicated region
      $region33: #{phead_forward.3} parent=11 // pred_check
        %p243 = pneg %p166
      $region34: #{phead_forward.3} parent=11 // pred_check_branch
        %245 = sbr.rel (%p243) target = $region36
      $region35: #{phead_forward.3} parent=11 // pred_region
        _
      $region36: #{phead_forward.3} parent=11 // pred_fallthru
        _
      // Predicated region
      $region37: #{phead_forward.3} parent=11 // pred_check
        %p246 = pneg %p187
      $region38: #{phead_forward.3} parent=11 // pred_check_branch
        %248 = sbr.rel (%p246) target = $region40
      $region39: #{phead_forward.3} parent=11 // pred_region
        _
      $region40: #{phead_forward.3} parent=11 // pred_fallthru
        _
    $region12: #{phead_forward.3} parent=5 // pred_fallthru
      _
    %p249 = scmp.lt.s32.totalorder %s14, 3
    // Predicated region
    $region41: #{phead_forward.3} parent=5 // pred_check
      %p250 = pneg %p249
    $region42: #{phead_forward.3} parent=5 // pred_check_branch
      %252 = sbr.rel (%p250) target = $region44
    $region43: #{phead_forward.3} parent=5 // pred_region
      // Predicated region
      $region45: #{phead_forward.3} parent=43 // pred_check
        %p253 = pneg %p34
      $region46: #{phead_forward.3} parent=43 // pred_check_branch
        %255 = sbr.rel (%p253) target = $region48
      $region47: #{phead_forward.3} parent=43 // pred_region
        %s256 = smul.u32 2, %s14
        %p257 = scmp.lt.s32.totalorder %s256, 5
        %s258 = scalar_select %p257, %s256, 5
        %s259 = smul.addr %s258, 4
        %s260 = scalar_lea.vmem %s0, %s259
        %s261 = smul.u32 2, %s14
      $region48: #{phead_forward.3} parent=43 // pred_fallthru
        _
    $region44: #{phead_forward.3} parent=5 // pred_fallthru
      _
    %p262 = scmp.le.s32.totalorder 1, %s14
    %p263 = scmp.lt.s32.totalorder %s14, 4
    %p264 = pnand %p262, %p263
    %p265 = pneg %p264
    // Predicated region
    $region49: #{phead_forward.3} parent=5 // pred_check
      _
    $region50: #{phead_forward.3} parent=5 // pred_check_branch
      %267 = sbr.rel (%p264) target = $region52
    $region51: #{phead_forward.3} parent=5 // pred_region
      %s268 = ssub.s32 %s14, 1
      %s269 = smul.u32 2, %s19
      %p270 = scmp.lt.s32.totalorder %s269, 5
      %s271 = scalar_select %p270, %s269, 5
      %s272 = smul.addr %s271, 4
      %s273 = scalar_lea.vmem %s0, %s272
      %p274 = pneg %p40
      %p275 = pneg %p37
      %p276 = pneg %p61
      %p277 = pneg %p58
      %p278 = pneg %p82
      %p279 = pneg %p79
      %p280 = pneg %p103
      %p281 = pneg %p100
      %p282 = pneg %p124
      %p283 = pneg %p121
      %p284 = pneg %p145
      %p285 = pneg %p142
      %p286 = pneg %p166
      %p287 = pneg %p163
      %p288 = pneg %p187
      %p289 = pneg %p184
      %p290 = pneg %p213
      %p291 = pneg %p210
      %s292 = smul.u32 2, %s19
      %p293 = scmp.lt.s32.totalorder %s292, 5
      %s294 = scalar_select %p293, %s292, 5
      %s295 = smul.addr %s294, 8
      %s296 = scalar_lea.vmem %s8, %s295
      %s297 = smul.u32 2, %s19
      %p298 = scmp.lt.s32.totalorder %s297, 5
      %s299 = scalar_select %p298, %s297, 5
      %s300 = smul.addr %s299, 4
      %s301 = scalar_lea.vmem %s0, %s300
      %s302 = smul.u32 2, %s19
      %s303 = smul.u32 2, %s19
      %p304 = scmp.lt.s32.totalorder %s303, 5
      %s305 = scalar_select %p304, %s303, 5
      %s306 = smul.addr %s305, 8
      %s307 = scalar_lea.vmem %s8, %s306
      %s308 = smul.u32 2, %s19
      %v309 = vld [vmem:[%s301] sm:$0xf]
      %v310 = vld [vmem:[%s301 + $0x4] sm:$0xf]
      %v311 = vld [vmem:[%s1] sm:$0xf]
      %v312 = vld [vmem:[%s1 + $0x4] sm:$0xf]
      %v313 = vld [vmem:[%s1 + $0x8] sm:$0xf]
      %v314 = vld [vmem:[%s1 + $0xc] sm:$0xf]
      %v315 = vld [vmem:[%s1 + $0x10] sm:$0xf]
      %v316 = vld [vmem:[%s1 + $0x14] sm:$0xf]
      %v317 = vld [vmem:[%s1 + $0x18] sm:$0xf]
      %v318 = vld [vmem:[%s1 + $0x1c] sm:$0xf]
      %v319 = vld [vmem:[%s1 + $0x20] sm:$0xf]
      %v320 = vld [vmem:[%s1 + $0x24] sm:$0xf]
      %v321 = vld [vmem:[%s1 + $0x28] sm:$0xf]
      %v322 = vld [vmem:[%s1 + $0x2c] sm:$0xf]
      %v323 = vld [vmem:[%s1 + $0x30] sm:$0xf]
      %v324 = vld [vmem:[%s1 + $0x34] sm:$0xf]
      %v325 = vld [vmem:[%s1 + $0x38] sm:$0xf]
      %v326 = vld [vmem:[%s1 + $0x3c] sm:$0xf]
      %v329 = vunpack.c.l.b16 %v309
      %v330 = vunpack.c.l.b16 %v310
      %v331 = vpack.c.b16 %v330, %v329
      %v349 = vunpack.c.l.b16 %v311
      %v350 = vunpack.c.l.b16 %v312
      %v351 = vunpack.c.l.b16 %v313
      %v352 = vunpack.c.l.b16 %v314
      %v353 = vunpack.c.l.b16 %v315
      %v354 = vunpack.c.l.b16 %v316
      %v355 = vunpack.c.l.b16 %v317
      %v356 = vunpack.c.l.b16 %v318
      %v357 = vunpack.c.l.b16 %v319
      %v358 = vunpack.c.l.b16 %v320
      %v359 = vunpack.c.l.b16 %v321
      %v360 = vunpack.c.l.b16 %v322
      %v361 = vunpack.c.l.b16 %v323
      %v362 = vunpack.c.l.b16 %v324
      %v363 = vunpack.c.l.b16 %v325
      %v364 = vunpack.c.l.b16 %v326
      %v365 = vpack.c.b16 %v350, %v349
      %v366 = vpack.c.b16 %v352, %v351
      %v367 = vpack.c.b16 %v354, %v353
      %v368 = vpack.c.b16 %v356, %v355
      %v369 = vpack.c.b16 %v358, %v357
      %v370 = vpack.c.b16 %v360, %v359
      %v371 = vpack.c.b16 %v362, %v361
      %v372 = vpack.c.b16 %v364, %v363
      %381 = vmatpush.bf16.msra.mxu0 %v372
      %382 = vmatpush.bf16.msra.mxu0 %v371
      %383 = vmatpush.bf16.msra.mxu0 %v370
      %384 = vmatpush.bf16.msra.mxu0 %v369
      %385 = vmatpush.bf16.msra.mxu0 %v368
      %386 = vmatpush.bf16.msra.mxu0 %v367
      %387 = vmatpush.bf16.msra.mxu0 %v366
      %388 = vmatpush.bf16.msra.mxu0 %v365
      %389 = vmatmul.bf16.gmra.mxu0 %v331
      %v390 = vpop.f32.mrf.mxu0
      %v391 = vadd.f32 0.0, %v390
      %v392 = vpop.f32.mrf.mxu0
      %v393 = vadd.f32 0.0, %v392
      %394 = vdwg.mxu0
      %v395 = vld [vmem:[%s2] sm:$0x1]
      %v396 = vmul.f32 %v395, 0.025
      %v397 = vld [vmem:[%s3] sm:$0x1]
      %v398 = vmul.f32 %v397, 0.025
      %v399 = vmul.f32 %v396, %v396
      %v400 = vsub.f32 %v398, %v399
      %v401 = vmax.f32 %v400, 0.0
      %v402 = vld [vmem:[%s4] sm:$0x1]
      %v403 = vadd.f32 %v401, 1e-05
      %v404 = vrsqrt.pop %v403
      %v405 = vmul.f32 %v404, %v403
      %v406 = vmul.f32 %v405, %v404
      %v407 = vmul.f32 0.5, %v406
      %v408 = vsub.f32 1.5, %v407
      %v409 = vmul.f32 %v404, %v408
      %vm410 = vweird.f32 %v403
      %vm411 = vweird.f32 %v404
      %vm412 = vmor %vm410, %vm411
      %v413 = vsel %vm412, %v404, %v409
      %v414 = vmul.f32 %v402, %v413
      %v415 = vld [vmem:[%s5] sm:$0x1]
      %v416 = vmul.f32 %v396, %v414
      %v417 = vsub.f32 %v415, %v416
      %v419 = vperm.slane %v414, 0
      %v421 = vmul.f32 %v391, %v419
      %v422 = vmul.f32 %v393, %v419
      %v424 = vperm.slane %v417, 0
      %v426 = vadd.f32 %v421, %v424
      %v427 = vadd.f32 %v422, %v424
      %v428 = vmax.f32 %v426, 0.0
      %v429 = vmax.f32 %v427, 0.0
      %v430 = vpack.c.bf16 %v429, %v428
      %v431 = vld [vmem:[%s6] sm:$0xf]
      %v432 = vld [vmem:[%s6 + $0x4] sm:$0xf]
      %v433 = vld [vmem:[%s6 + $0x8] sm:$0xf]
      %v434 = vld [vmem:[%s6 + $0xc] sm:$0xf]
      %v435 = vld [vmem:[%s6 + $0x10] sm:$0xf]
      %v436 = vld [vmem:[%s6 + $0x14] sm:$0xf]
      %v437 = vld [vmem:[%s6 + $0x18] sm:$0xf]
      %v438 = vld [vmem:[%s6 + $0x1c] sm:$0xf]
      %v439 = vld [vmem:[%s6 + $0x20] sm:$0xf]
      %v440 = vld [vmem:[%s6 + $0x24] sm:$0xf]
      %v441 = vld [vmem:[%s6 + $0x28] sm:$0xf]
      %v442 = vld [vmem:[%s6 + $0x2c] sm:$0xf]
      %v443 = vld [vmem:[%s6 + $0x30] sm:$0xf]
      %v444 = vld [vmem:[%s6 + $0x34] sm:$0xf]
      %v445 = vld [vmem:[%s6 + $0x38] sm:$0xf]
      %v446 = vld [vmem:[%s6 + $0x3c] sm:$0xf]
      %v447 = vld [vmem:[%s7] sm:$0x1]
      %v449 = vperm.slane %v447, 0
      %v467 = vunpack.c.l.b16 %v431
      %v468 = vunpack.c.l.b16 %v432
      %v469 = vunpack.c.l.b16 %v433
      %v470 = vunpack.c.l.b16 %v434
      %v471 = vunpack.c.l.b16 %v435
      %v472 = vunpack.c.l.b16 %v436
      %v473 = vunpack.c.l.b16 %v437
      %v474 = vunpack.c.l.b16 %v438
      %v475 = vunpack.c.l.b16 %v439
      %v476 = vunpack.c.l.b16 %v440
      %v477 = vunpack.c.l.b16 %v441
      %v478 = vunpack.c.l.b16 %v442
      %v479 = vunpack.c.l.b16 %v443
      %v480 = vunpack.c.l.b16 %v444
      %v481 = vunpack.c.l.b16 %v445
      %v482 = vunpack.c.l.b16 %v446
      %v483 = vpack.c.b16 %v468, %v467
      %v484 = vpack.c.b16 %v470, %v469
      %v485 = vpack.c.b16 %v472, %v471
      %v486 = vpack.c.b16 %v474, %v473
      %v487 = vpack.c.b16 %v476, %v475
      %v488 = vpack.c.b16 %v478, %v477
      %v489 = vpack.c.b16 %v480, %v479
      %v490 = vpack.c.b16 %v482, %v481
      %499 = vmatpush.bf16.msra.mxu0 %v490
      %500 = vmatpush.bf16.msra.mxu0 %v489
      %501 = vmatpush.bf16.msra.mxu0 %v488
      %502 = vmatpush.bf16.msra.mxu0 %v487
      %503 = vmatpush.bf16.msra.mxu0 %v486
      %504 = vmatpush.bf16.msra.mxu0 %v485
      %505 = vmatpush.bf16.msra.mxu0 %v484
      %506 = vmatpush.bf16.msra.mxu0 %v483
      %507 = vmatmul.bf16.gmra.mxu0 %v430
      %v508 = vpop.f32.mrf.mxu0
      %v509 = vadd.f32 %v449, %v508
      %v510 = vpop.f32.mrf.mxu0
      %v511 = vadd.f32 %v449, %v510
      %512 = vdwg.mxu0
      %513 = vst [vmem:[%s307] sm:$0xff] %v509
      %514 = vst [vmem:[%s307 + $0x8] sm:$0xff] %v511
      %s515 = smul.u32 2, %s19
      %p516 = scmp.lt.s32.totalorder %s515, 5
      %s517 = scalar_select %p516, %s515, 5
      %s518 = smul.addr %s517, 8
      %s519 = scalar_lea.vmem %s8, %s518
      // Predicated region
      $region53: #{phead_forward.3} parent=51 // pred_check
        %p520 = pneg %p210
      $region54: #{phead_forward.3} parent=51 // pred_check_branch
        %522 = sbr.rel (%p520) target = $region56
      $region55: #{phead_forward.3} parent=51 // pred_region
        %s523 = smul.u32 2, %s19
      $region56: #{phead_forward.3} parent=51 // pred_fallthru
        _
    $region52: #{phead_forward.3} parent=5 // pred_fallthru
      _
    %p524 = scmp.le.s32.totalorder 2, %s14
    // Predicated region
    $region57: #{phead_forward.3} parent=5 // pred_check
      %p525 = pneg %p524
    $region58: #{phead_forward.3} parent=5 // pred_check_branch
      %527 = sbr.rel (%p525) target = $region60
    $region59: #{phead_forward.3} parent=5 // pred_region
      %s528 = ssub.s32 %s14, 2
      // Predicated region
      $region61: #{phead_forward.3} parent=59 // pred_check
        %p529 = pneg %p216
      $region62: #{phead_forward.3} parent=59 // pred_check_branch
        %531 = sbr.rel (%p529) target = $region64
      $region63: #{phead_forward.3} parent=59 // pred_region
        %s532 = smul.u32 2, %s20
        %p533 = scmp.lt.s32.totalorder %s532, 5
        %s534 = scalar_select %p533, %s532, 5
        %s535 = smul.addr %s534, 8
        %s536 = scalar_lea.vmem %s8, %s535
      $region64: #{phead_forward.3} parent=59 // pred_fallthru
        _
    $region60: #{phead_forward.3} parent=5 // pred_fallthru
      _
  $region6: #{phead_forward.3} parent=0 // loop_footer
    %s18 = sadd.s32 1, %s14
  $region7: #{phead_forward.3} parent=0 // loop_footer_branch
    %13 = sbr.rel target = $region3
  $region8: #{phead_forward.3} parent=0 // loop_exit
    _

</llo_original>
